<compile_context>
chip_gen: v6e
topology: v6e:2x2x1
jax: 0.10.0
libtpu: 0.0.40
codegen_flags: <defaults>
</compile_context>

<pallas_src>
import functools
import math

import jax
import jax.numpy as jnp
from jax.experimental import pallas as pl
from jax.experimental.pallas import tpu as pltpu


def build_sinusoidal_pe(d_model: int, max_len: int = 512) -> jnp.ndarray:
    """PE buffer identical to the PyTorch __init__: shape (max_len, 1, d_model), float32.

    Like the PyTorch original, assumes d_model is even.
    """
    position = jnp.arange(0, max_len, dtype=jnp.float32)[:, None]             # (max_len, 1)
    div_term = jnp.exp(
        jnp.arange(0, d_model, 2, dtype=jnp.float32) * (-math.log(10000.0) / d_model)
    )                                                                          # (d_model/2,)
    angles = position * div_term                                               # (max_len, d_model/2)
    pe = jnp.zeros((max_len, d_model), dtype=jnp.float32)
    pe = pe.at[:, 0::2].set(jnp.sin(angles))
    pe = pe.at[:, 1::2].set(jnp.cos(angles))
    # unsqueeze(0).transpose(0, 1) -> (max_len, 1, d_model)
    return pe[:, None, :]


# ----------------------------------------------------------------------------- kernels

def _pe_add_kernel(x_ref, pe_ref, o_ref):
    # Plain (broadcasting) add. Used for:
    #   3D: x (ts, B, D) + pe (ts, 1, D)  -> broadcast over the batch (sublane) axis in VMEM
    #   2D: x (ts, W)    + pe (ts, W)     -> same-shape lane-dense add
    o_ref[...] = (x_ref[...] + pe_ref[...]).astype(o_ref.dtype)


def _pe_add_folded_kernel(x_ref, pe_ref, o_ref, *, batch: int):
    # Folded layout: x (ts, B*D) + pe (ts, D).  Replicate pe across batch along the lane
    # axis *inside VMEM* so pe HBM traffic stays at 1/B of x traffic.  The lane concat is
    # VPU/XLU work that is free under the DMA-bound roofline.
    pe_blk = pe_ref[...]
    if batch > 1:
        pe_blk = jnp.concatenate([pe_blk] * batch, axis=-1)
    o_ref[...] = (x_ref[...] + pe_blk).astype(o_ref.dtype)


# ----------------------------------------------------------------------------- sizing helpers

def _round_up(v: int, m: int) -> int:
    return ((v + m - 1) // m) * m


def _vmem_ceiling_bytes() -> int:
    """~3/4 of physical per-core VMEM: ~48 MiB on v7x (64 MiB/TC), ~96 MiB on v5e/v6e (128 MiB)."""
    try:
        cap = int(pltpu.get_tpu_info().vmem_capacity_bytes)
    except Exception:
        cap = 64 << 20  # conservative fallback: assume v7x per-TC capacity
    return (cap * 3) // 4


def _pick_tile_s(seq_len: int, hbm_row_bytes: int, sub: int,
                 db_row_bytes: int, ceiling: int, headroom: int, tile_s) -> int:
    """Sequence-tile length.

    Targets ~6 MiB of x per tile (HBM-streaming sweet spot, ~85%+ of roofline), keeps the
    grid at >= ~4 steps when the sequence is long enough (pipelining + v7x dual-TC
    sharding), respects the double-buffered in/out/pe VMEM footprint, and rounds to the
    dtype-aware sublane granularity (8 f32 / 16 bf16 / 32 int8-fp8).
    """
    if tile_s is None:
        target = 6 << 20
        ts = max(sub, ((target // max(hbm_row_bytes, 1)) // sub) * sub)
        if seq_len >= 4 * sub:
            ts = min(ts, _round_up(pl.cdiv(seq_len, 4), sub))
    else:
        ts = int(tile_s)
    # Cap by the VMEM ceiling (double-buffered x-in + x-out + pe, padded sizes).
    ts_vmem = max(sub, (((ceiling - headroom) // max(db_row_bytes, 1)) // sub) * sub)
    ts = min(ts, ts_vmem, seq_len)
    if ts < seq_len:
        ts = max(sub, (ts // sub) * sub)
    return ts


# ----------------------------------------------------------------------------- wrapper

def positional_encoding_forward(x: jnp.ndarray, pe: jnp.ndarray, *,
                                tile_s=None, donate_x: bool = True) -> jnp.ndarray:
    """Compute x + pe[:seq_len]  (PositionalEncoding.forward).

    x:  (seq_len, batch, d_model), any float dtype.
    pe: (max_len, 1, d_model) float32 buffer from build_sinusoidal_pe (max_len >= seq_len).

    donate_x=True aliases x's buffer into the output (the add is destructive). Callers that
    still need x after this call should pass donate_x=False; otherwise XLA either inserts a
    defensive copy or (under jit with donated args) x is clobbered.
    """
    S, B, D = x.shape
    assert pe.ndim == 3 and pe.shape[1] == 1 and pe.shape[2] == D and pe.shape[0] >= S

    pe_s = pe[:S].astype(x.dtype)                     # static slice + cast (pe traffic in x.dtype)

    itemsize = x.dtype.itemsize
    sub = max(8, 32 // itemsize)                      # sublane granularity: 8 f32 / 16 bf16 / 32 i8

    # Layout choice: keep the 3D (ts, B, D) block only when both the sublane axis (B) and
    # the lane axis (D) are dense; otherwise fold batch into the lane axis.
    use_3d = (D % 128 == 0) and (B >= 8)

    headroom = 2 << 20
    ceiling = _vmem_ceiling_bytes()

    if use_3d:
        x_in = x                                                   # (S, B, D)
        pe_in = pe_s                                               # (S, 1, D)
        x_row_pad = _round_up(B, 8) * _round_up(D, 128) * itemsize  # padded VMEM bytes / seq row
        pe_row_pad = 8 * _round_up(D, 128) * itemsize               # (ts,1,D): sublane 1 -> 8
        kernel = _pe_add_kernel
    else:
        x_in = x.reshape(S, B * D)                                  # fold batch into lanes
        x_row_pad = _round_up(B * D, 128) * itemsize
        if B <= 16:
            pe_in = pe_s[:, 0, :]                                   # (S, D); replicate in-kernel
            pe_row_pad = _round_up(D, 128) * itemsize
            kernel = functools.partial(_pe_add_folded_kernel, batch=B)
        else:
            # Rare corner (large B with ragged D): pre-tile pe in HBM instead of emitting a
            # very wide in-kernel concatenate.
            pe_in = jnp.tile(pe_s[:, 0, :], (1, B))                 # (S, B*D)
            pe_row_pad = x_row_pad
            kernel = _pe_add_kernel

    hbm_row_bytes = B * D * itemsize                    # actual HBM bytes of x per seq row
    db_row_bytes = 2 * (2 * x_row_pad + pe_row_pad)     # double-buffered x-in + x-out + pe

    ts = _pick_tile_s(S, hbm_row_bytes, sub, db_row_bytes, ceiling, headroom, tile_s)
    grid = (pl.cdiv(S, ts),)

    if use_3d:
        x_spec = pl.BlockSpec((ts, B, D), lambda i: (i, 0, 0))
        pe_spec = pl.BlockSpec((ts, 1, D), lambda i: (i, 0, 0))
    else:
        x_spec = pl.BlockSpec((ts, x_in.shape[1]), lambda i: (i, 0))
        pe_spec = pl.BlockSpec((ts, pe_in.shape[1]), lambda i: (i, 0))

    ts_pad = _round_up(ts, sub)
    vmem_needed = ts_pad * db_row_bytes + headroom
    vmem_limit = int(min(max(vmem_needed, 16 << 20), ceiling))

    out = pl.pallas_call(
        kernel,
        out_shape=jax.ShapeDtypeStruct(x_in.shape, x.dtype),
        grid=grid,
        in_specs=[x_spec, pe_spec],
        out_specs=x_spec,
        input_output_aliases={0: 0} if donate_x else {},
        compiler_params=pltpu.CompilerParams(
            dimension_semantics=("parallel",),       # independent seq tiles -> both TCs on v7x
            vmem_limit_bytes=vmem_limit,
        ),
    )(x_in, pe_in)

    return out.reshape(S, B, D)


# ----------------------------------------------------------------------------- demo / checks

if __name__ == "__main__":
    max_len = 512
    key = jax.random.PRNGKey(0)
    k1, k2, k3, k4 = jax.random.split(key, 4)

    # 1) Original toy config: (seq=8, batch=2, d_model=32) f32 -> folded path, single tile.
    d_model, seq_len, batch = 32, 8, 2
    x1 = jax.random.normal(k1, (seq_len, batch, d_model), dtype=jnp.float32)
    pe1 = build_sinusoidal_pe(d_model, max_len)
    ref1 = x1 + pe1[:seq_len]                         # reference computed before the aliased call
    out1 = jax.block_until_ready(positional_encoding_forward(x1, pe1))
    assert out1.shape == (seq_len, batch, d_model)
    assert jnp.allclose(out1, ref1, atol=1e-6, rtol=1e-6)

    # 2) Lane-aligned folded path (D % 128 == 0, B < 8) with a multi-step pipelined grid.
    d2, s2, b2 = 128, 32, 2
    x2 = jax.random.normal(k2, (s2, b2, d2), dtype=jnp.float32)
    pe2 = build_sinusoidal_pe(d2, max_len)
    ref2 = x2 + pe2[:s2]
    out2 = jax.block_until_ready(positional_encoding_forward(x2, pe2, tile_s=8))
    assert jnp.allclose(out2, ref2, atol=1e-6, rtol=1e-6)

    # 3) 3D path (B >= 8 and D % 128 == 0), two grid steps, pe broadcast over batch in VMEM.
    d3, s3, b3 = 128, 16, 8
    x3 = jax.random.normal(k3, (s3, b3, d3), dtype=jnp.float32)
    pe3 = build_sinusoidal_pe(d3, max_len)
    ref3 = x3 + pe3[:s3]
    out3 = jax.block_until_ready(positional_encoding_forward(x3, pe3, tile_s=8))
    assert jnp.allclose(out3, ref3, atol=1e-6, rtol=1e-6)

    # 4) bf16 folded path: dtype-aware sublane rounding (16) + pe pre-cast to bf16.
    d4, s4, b4 = 128, 32, 2
    x4 = jax.random.normal(k4, (s4, b4, d4), dtype=jnp.float32).astype(jnp.bfloat16)
    pe4 = build_sinusoidal_pe(d4, max_len)
    ref4 = x4 + pe4[:s4].astype(jnp.bfloat16)
    out4 = jax.block_until_ready(positional_encoding_forward(x4, pe4, tile_s=16))
    assert out4.dtype == jnp.bfloat16
    assert jnp.allclose(out4.astype(jnp.float32), ref4.astype(jnp.float32), atol=1e-2, rtol=1e-2)

    print("KERNEL_OK")
</pallas_src>

<mosaic_0001>
module attributes {stable_mosaic.version = 11 : i64} {
  func.func @_pe_add_folded_kernel(%arg0: i32, %arg1: memref<8x64xf32, #tpu.memory_space<vmem>>, %arg2: memref<8x32xf32, #tpu.memory_space<vmem>>, %arg3: memref<8x64xf32, #tpu.memory_space<vmem>>) attributes {dimension_semantics = [#tpu.dimension_semantics<parallel>], iteration_bounds = array<i64: 1>, scalar_prefetch = 0 : i64, scratch_operands = 0 : i64, tpu.core_type = #tpu.core_type<tc>, window_params = [{transform_indices = @transform_0, window_bounds = array<i64: 8, 64>}, {transform_indices = @transform_1, window_bounds = array<i64: 8, 32>}, {transform_indices = @transform_2, window_bounds = array<i64: 8, 64>}]} {
    %c0 = arith.constant 0 : index
    %c0_0 = arith.constant 0 : index
    %0 = vector.load %arg2[%c0, %c0_0] : memref<8x32xf32, #tpu.memory_space<vmem>>, vector<8x32xf32>
    %1 = tpu.concatenate %0, %0 in 1 : vector<8x32xf32>, vector<8x32xf32> -> vector<8x64xf32>
    %c0_1 = arith.constant 0 : index
    %c0_2 = arith.constant 0 : index
    %2 = vector.load %arg1[%c0_1, %c0_2] : memref<8x64xf32, #tpu.memory_space<vmem>>, vector<8x64xf32>
    %3 = arith.addf %2, %1 : vector<8x64xf32>
    %c0_3 = arith.constant 0 : index
    %c0_4 = arith.constant 0 : index
    %4 = vector.load %arg3[%c0_3, %c0_4] : memref<8x64xf32, #tpu.memory_space<vmem>>, vector<8x64xf32>
    tpu.vector_store %arg3[%c0_3, %c0_4], %3 {strides = array<i32>} : memref<8x64xf32, #tpu.memory_space<vmem>>, vector<8x64xf32>,
    return
  }
  func.func @transform_0(%arg0: i32) -> (i32, i32) {
    %c0_i32 = arith.constant 0 : i32
    %c0_i32_0 = arith.constant 0 : i32
    return %arg0, %c0_i32 : i32, i32
  }
  func.func @transform_1(%arg0: i32) -> (i32, i32) {
    %c0_i32 = arith.constant 0 : i32
    %c0_i32_0 = arith.constant 0 : i32
    return %arg0, %c0_i32 : i32, i32
  }
  func.func @transform_2(%arg0: i32) -> (i32, i32) {
    %c0_i32 = arith.constant 0 : i32
    %c0_i32_0 = arith.constant 0 : i32
    return %arg0, %c0_i32 : i32, i32
  }
}

</mosaic_0001>

<llo_original>
// kernel: tpu_custom_call.1
$region0: #{tpu_custom_call.1}
  #allocation0 [shape = 'u32[]', space=smem, size = 0x4, offset = 0x4, fixed_abs, tag = 'smem constant byte address 0x4 - core index']
  #allocation1 [shape = 'u32[144,128]{1,0:T(1,128)}', space=vmem, size = 0x12000, scoped, tag = 'internal scratch']
  %s0 = inlined_call_operand.hbm [shape: f32[8,64], index: 0, kind: input, shape index: {}, may-alias: {0,2}]
  %s1 = inlined_call_operand.vmem [shape: f32[8,32], index: 1, kind: input, shape index: {}]
  %s2 = inlined_call_operand.hbm [shape: f32[8,64], index: 2, kind: output, shape index: {}, may-alias: {0,2}]
  %s3 = sld [smem:[#allocation0]]
  $region22: #{tpu_custom_call.1} parent=0
    _
  %s5 = ssub.s32 1, %s3
  %s6 = scalar_select 0, %s5, %s3
  $region1: #{tpu_custom_call.1} parent=0
    #allocation2 [shape = 'u8[4096]{0}', space=vmem, size = 0x1000, scoped, tag = 'input window, operand 0, single buffered']
    #allocation3 [shape = 's32[1]{0}', space=sflag, size = 0x4, scoped, tag = 'scoped memory for tpu_custom_call.1']
    #allocation4 [shape = 's32[1]{0}', space=sflag, size = 0x4, scoped, tag = 'scoped memory for tpu_custom_call.1']
    #allocation5 [shape = 'u8[4096]{0}', space=vmem, size = 0x1000, scoped, tag = 'output window, operand 0, single buffered']
    %7 = vsyncpa [#allocation3], 0
    %8 = vsyncpa [#allocation4], 0
    // Predicated region
    $region2: #{tpu_custom_call.1} parent=1 // pred_check
      _
    $region3: #{tpu_custom_call.1} parent=1 // pred_check_branch
      %10 = sbr.rel (0) target = $region5
    $region4: #{tpu_custom_call.1} parent=1 // pred_region
      %s12 = ssub.s32 128, 128
      %13 = vsyncadd [#allocation3], %s12
      %s15 = sshll.u32 [#allocation2], 4
      %s16 = int_to_ptr.vmem [resolvable:$true] %s15
      %18 = dma.hbm_to_vmem [thread:$0]  %s0, 128, %s16, [#allocation3]
    $region5: #{tpu_custom_call.1} parent=1 // pred_fallthru
      _
    // Predicated region
    $region6: #{tpu_custom_call.1} parent=1 // pred_check
      _
    $region7: #{tpu_custom_call.1} parent=1 // pred_check_branch
      %20 = sbr.rel (0) target = $region9
    $region8: #{tpu_custom_call.1} parent=1 // pred_region
      _
    $region9: #{tpu_custom_call.1} parent=1 // pred_fallthru
      _
    // Predicated region
    $region10: #{tpu_custom_call.1} parent=1 // pred_check
      _
    $region11: #{tpu_custom_call.1} parent=1 // pred_check_branch
      %22 = sbr.rel (0) target = $region13
    $region12: #{tpu_custom_call.1} parent=1 // pred_region
      %23 = dma.done [#allocation3], 128
    $region13: #{tpu_custom_call.1} parent=1 // pred_fallthru
      _
    %v24 = vld [vmem:[%s1] sm:$0xff]
    %26 = vrot.lane.b32.xlu0 %v24, 32
    %v27 = vpop.permute.xlu0 %26
    %vm29 = vcmask 261120
    %v30 = vsel %vm29, %v24, %v27
    %v31 = vld [vmem:[#allocation2] sm:$0xff]
    %v32 = vadd.f32 %v31, %v30
    %vm33 = vcmask 523264
    %34 = vst.msk [vmem:[#allocation5] sm:$0xff] %vm33, %v32
    // Predicated region
    $region14: #{tpu_custom_call.1} parent=1 // pred_check
      _
    $region15: #{tpu_custom_call.1} parent=1 // pred_check_branch
      %36 = sbr.rel (0) target = $region17
    $region16: #{tpu_custom_call.1} parent=1 // pred_region
      %s38 = ssub.s32 128, 128
      %39 = vsyncadd [#allocation4], %s38
      %s41 = sshll.u32 [#allocation5], 4
      %s42 = int_to_ptr.vmem [resolvable:$true] %s41
      %44 = dma.vmem_to_hbm [thread:$0]  %s42, 128, %s2, [#allocation4]
    $region17: #{tpu_custom_call.1} parent=1 // pred_fallthru
      _
    // Predicated region
    $region18: #{tpu_custom_call.1} parent=1 // pred_check
      _
    $region19: #{tpu_custom_call.1} parent=1 // pred_check_branch
      %46 = sbr.rel (0) target = $region21
    $region20: #{tpu_custom_call.1} parent=1 // pred_region
      %47 = dma.done [#allocation4], 128
    $region21: #{tpu_custom_call.1} parent=1 // pred_fallthru
      _
    %48 = vsyncpa [#allocation3], 1
    %49 = vsyncpa [#allocation4], 1

</llo_original>
